<compile_context>
chip_gen: v7x
topology: tpu7x:2x2x1
jax: 0.10.0
libtpu: 0.0.40
codegen_flags: <defaults>
</compile_context>

<pallas_src>
import functools

import jax
import jax.numpy as jnp
from jax import lax
from jax.experimental import pallas as pl
from jax.experimental.pallas import tpu as pltpu


def _cdiv(a, b):
    return (a + b - 1) // b


@functools.lru_cache(maxsize=None)
def _vmem_limit_bytes():
    """Generation-aware VMEM limit: ~48 MiB on v7x (64 MiB VMEM), ~100 MiB on v5e/v6e."""
    try:
        cap = int(pltpu.get_tpu_info().vmem_capacity_bytes)
    except Exception:
        cap = 64 << 20  # conservative fallback (v7x-sized)
    return int(max(32 << 20, min(cap - (16 << 20), 100 << 20)))


def _softconv_kernel(inv_kk, neg_slope, xp_ref, om_ref, w_ref, b_ref, out_ref, nm_ref):
    # conv2d(x * mask) over this tile of patches == (Cout,K) x (K,TM) MXU matmul (bias later)
    raw = jnp.dot(w_ref[...], xp_ref[...], preferred_element_type=jnp.float32)   # (Cout, TM)

    out_mask = om_ref[...]                                     # (1, TM) f32 (precomputed window-sum)
    mask_less_than_one = out_mask <= 1.0
    mask_sum = jnp.where(mask_less_than_one, 1.0, out_mask)    # masked_fill_(<=1, 1.0)

    # (output - bias)/mask_sum + bias, with output = raw + bias  =>  raw/mask_sum + bias
    inv = 1.0 / mask_sum                                       # exact; a single row -> negligible
    out = raw * inv + b_ref[...]
    out = jnp.where(mask_less_than_one, 0.0, out)              # masked_fill_(<=1, 0.0)
    out = jnp.where(out >= 0.0, out, neg_slope * out)          # LeakyReLU(0.2)

    out_ref[...] = out.astype(out_ref.dtype)
    nm_ref[...] = (mask_sum * inv_kk).astype(nm_ref.dtype)     # new_mask = mask_sum / (kh*kw)


@functools.partial(jax.jit, static_argnames=("stride", "padding", "dilation",
                                             "neg_slope", "tile_m", "out_dtype"))
def soft_conv2d(x, mask, weight, bias, *, stride=1, padding=0, dilation=1,
                neg_slope=0.2, tile_m=2048, out_dtype=jnp.float32):
    """x: (N, Cin, H, W), mask: (N, 1, H, W), weight: (Cout, Cin, kh, kw), bias: (Cout,)."""
    N, Cin, H, W = x.shape
    Cout, _, kh, kw = weight.shape
    KK = kh * kw

    # ZeroPad2d(padding)
    xp = jnp.pad(x, ((0, 0), (0, 0), (padding, padding), (padding, padding)))
    mp = jnp.pad(mask.astype(jnp.float32),
                 ((0, 0), (0, 0), (padding, padding), (padding, padding)))

    Hp, Wp = H + 2 * padding, W + 2 * padding
    Ho = (Hp - dilation * (kh - 1) - 1) // stride + 1
    Wo = (Wp - dilation * (kw - 1) - 1) // stride + 1
    M = N * Ho * Wo

    # mask_conv (all-ones (1,1,kh,kw) kernel) done once, in f32, in the wrapper.
    ones_k = jnp.ones((1, 1, kh, kw), jnp.float32)
    out_mask = lax.conv_general_dilated(
        mp, ones_k, (stride, stride), 'VALID',
        rhs_dilation=(dilation, dilation),
        dimension_numbers=('NCHW', 'OIHW', 'NCHW'))             # (N, 1, Ho, Wo)
    om_row = out_mask.reshape(1, M)                             # (1, M): m = n*Ho*Wo + ho*Wo + wo

    # Masked input in bf16, transposed while still SMALL (Cin*M-sized) so the big
    # (K, M) patch array falls out of stack+reshape without any further transpose.
    xm = (xp * mp).astype(jnp.bfloat16)                         # (N, Cin, Hp, Wp)
    xT = xm.transpose(1, 0, 2, 3)                               # (Cin, N, Hp, Wp)

    cols = []
    for i in range(kh):
        for j in range(kw):
            cols.append(xT[:, :,
                           i * dilation: i * dilation + (Ho - 1) * stride + 1: stride,
                           j * dilation: j * dilation + (Wo - 1) * stride + 1: stride])
    # (Cin, kh*kw, N, Ho, Wo) -> (K, M); K order (c, i, j) matches OIHW weight flatten.
    K = Cin * KK
    x_patches = jnp.stack(cols, axis=1).reshape(K, M)

    w2d = weight.reshape(Cout, K).astype(jnp.bfloat16)          # (Cout, K)
    b2d = bias.reshape(Cout, 1).astype(jnp.float32)             # epilogue stays f32

    # --- tiling: largest lane tile that (a) fits the generation-aware VMEM budget and
    #     (b) still gives >= 4 grid steps (pipelining + 2 TCs on v7x). ---
    vmem_limit = _vmem_limit_bytes()
    budget = vmem_limit - (8 << 20)                             # leave Mosaic scratch headroom
    out_bytes = jnp.dtype(out_dtype).itemsize

    def vmem_needed(t):
        return (2 * t * K * 2                  # x-patch tiles (bf16, double-buffered)
                + 2 * t * 4                    # out_mask row tiles (f32)
                + 2 * t * Cout * out_bytes     # out tiles (double-buffered)
                + 2 * t * 4                    # new_mask tiles
                + Cout * K * 2 + Cout * 4)     # weight + bias, single-buffered (resident)

    tile = max(128, (min(tile_m, _cdiv(M, 128) * 128) // 128) * 128)
    while tile > 128 and (_cdiv(M, tile) < 4 or vmem_needed(tile) > budget):
        tile = max(128, ((tile // 2) // 128) * 128)

    Mp = _cdiv(M, tile) * tile
    if Mp != M:
        x_patches = jnp.pad(x_patches, ((0, 0), (0, Mp - M)))
        om_row = jnp.pad(om_row, ((0, 0), (0, Mp - M)))

    cost = pl.CostEstimate(
        flops=2 * Mp * K * Cout,
        transcendentals=0,
        bytes_accessed=(Mp * K * 2 + Mp * 4 + Cout * K * 2 + Cout * 4
                        + Mp * Cout * out_bytes + Mp * 4),
    )

    kernel = functools.partial(_softconv_kernel, float(1.0 / KK), float(neg_slope))
    out2d, nm2d = pl.pallas_call(
        kernel,
        out_shape=(jax.ShapeDtypeStruct((Cout, Mp), out_dtype),
                   jax.ShapeDtypeStruct((1, Mp), jnp.float32)),
        grid=(Mp // tile,),
        in_specs=[
            pl.BlockSpec((K, tile), lambda i: (0, i)),                 # x patches tile (lane-dense M)
            pl.BlockSpec((1, tile), lambda i: (0, i)),                 # precomputed out_mask row
            pl.BlockSpec(memory_space=pltpu.MemorySpace.VMEM),         # weight: resident, single copy
            pl.BlockSpec(memory_space=pltpu.MemorySpace.VMEM),         # bias:   resident, single copy
        ],
        out_specs=(
            pl.BlockSpec((Cout, tile), lambda i: (0, i)),              # lane-dense output stores
            pl.BlockSpec((1, tile), lambda i: (0, i)),
        ),
        compiler_params=pltpu.CompilerParams(
            dimension_semantics=("parallel",),
            vmem_limit_bytes=int(vmem_limit)),
        cost_estimate=cost,
    )(x_patches, om_row, w2d, b2d)

    out = out2d[:, :M].reshape(Cout, N, Ho, Wo).transpose(1, 0, 2, 3)          # (N, Cout, Ho, Wo)
    new_mask = nm2d[:, :M].reshape(1, N, Ho, Wo).transpose(1, 0, 2, 3)         # (N, 1, Ho, Wo)
    return out, new_mask


def _reference(x, mask, weight, bias, stride, padding, dilation, neg_slope=0.2):
    """Plain-JAX f32 replica of the PyTorch forward for validation."""
    xp = jnp.pad(x, ((0, 0), (0, 0), (padding, padding), (padding, padding)))
    mp = jnp.pad(mask, ((0, 0), (0, 0), (padding, padding), (padding, padding)))
    kh, kw = weight.shape[2], weight.shape[3]
    dn = ('NCHW', 'OIHW', 'NCHW')
    raw = lax.conv_general_dilated(xp * mp, weight, (stride, stride), 'VALID',
                                   rhs_dilation=(dilation, dilation), dimension_numbers=dn)
    out_mask = lax.conv_general_dilated(mp, jnp.ones((1, 1, kh, kw), mp.dtype),
                                        (stride, stride), 'VALID',
                                        rhs_dilation=(dilation, dilation), dimension_numbers=dn)
    mlt1 = out_mask <= 1.0
    mask_sum = jnp.where(mlt1, 1.0, out_mask)
    out = raw / mask_sum + bias[None, :, None, None]
    out = jnp.where(mlt1, 0.0, out)
    out = jnp.where(out >= 0.0, out, neg_slope * out)
    new_mask = mask_sum / (kh * kw)
    return out, new_mask


if __name__ == "__main__":
    key = jax.random.PRNGKey(0)
    k1, k2, k3, k4 = jax.random.split(key, 4)

    N, Cin, Cout, H, W, ksz = 2, 4, 8, 16, 16, 3
    stride, padding, dilation = 1, 1, 1

    x = jax.random.normal(k1, (N, Cin, H, W), jnp.float32)
    mask = (jax.random.uniform(k2, (N, 1, H, W)) > 0.5).astype(jnp.float32)

    # deterministic parameter init mirroring the module's __init__
    fan_in = Cin * ksz * ksz
    weight = jax.random.normal(k3, (Cout, Cin, ksz, ksz), jnp.float32) * (2.0 / fan_in) ** 0.5  # kaiming_normal
    bound = 1.0 / (fan_in ** 0.5)
    bias = jax.random.uniform(k4, (Cout,), jnp.float32, -bound, bound)  # default Conv2d bias init

    out, new_mask = soft_conv2d(x, mask, weight, bias,
                                stride=stride, padding=padding, dilation=dilation)
    jax.block_until_ready((out, new_mask))

    ref_out, ref_mask = _reference(x, mask, weight, bias, stride, padding, dilation)
    assert out.shape == (N, Cout, H, W) and new_mask.shape == (N, 1, H, W)
    # bf16 patch/weight feeds -> relaxed tolerance vs the f32 reference; mask path is exact f32
    assert jnp.allclose(out, ref_out, atol=5e-2, rtol=5e-2)
    assert jnp.allclose(new_mask, ref_mask, atol=1e-5, rtol=1e-5)

    print("KERNEL_OK")
</pallas_src>

<mosaic_0001>
module attributes {stable_mosaic.version = 11 : i64} {
  func.func @_softconv_kernel(%arg0: i32, %arg1: memref<36x128xbf16, #tpu.memory_space<vmem>>, %arg2: memref<1x128xf32, #tpu.memory_space<vmem>>, %arg3: memref<8x36xbf16, #tpu.memory_space<vmem>>, %arg4: memref<8x1xf32, #tpu.memory_space<vmem>>, %arg5: memref<8x128xf32, #tpu.memory_space<vmem>>, %arg6: memref<1x128xf32, #tpu.memory_space<vmem>>) attributes {dimension_semantics = [#tpu.dimension_semantics<parallel>], iteration_bounds = array<i64: 4>, scalar_prefetch = 0 : i64, scratch_operands = 0 : i64, tpu.core_type = #tpu.core_type<tc>, window_params = [{transform_indices = @transform_0, window_bounds = array<i64: 36, 128>}, {transform_indices = @transform_1, window_bounds = array<i64: 1, 128>}, {pipeline_mode = #tpu.pipeline_mode<synchronous>, transform_indices = @transform_2, window_bounds = array<i64: 8, 36>}, {pipeline_mode = #tpu.pipeline_mode<synchronous>, transform_indices = @transform_3, window_bounds = array<i64: 8, 1>}, {transform_indices = @transform_4, window_bounds = array<i64: 8, 128>}, {transform_indices = @transform_5, window_bounds = array<i64: 1, 128>}]} {
    %c0 = arith.constant 0 : index
    %c0_0 = arith.constant 0 : index
    %0 = vector.load %arg3[%c0, %c0_0] : memref<8x36xbf16, #tpu.memory_space<vmem>>, vector<8x36xbf16>
    %c0_1 = arith.constant 0 : index
    %c0_2 = arith.constant 0 : index
    %1 = vector.load %arg1[%c0_1, %c0_2] : memref<36x128xbf16, #tpu.memory_space<vmem>>, vector<36x128xbf16>
    %cst = arith.constant dense<0.000000e+00> : vector<8x128xf32>
    %2 = tpu.matmul %0, %1, %cst {dimension_numbers = #tpu.dot_dimension_numbers<[1], [0], [0], [1], [0, 0, 1, 1], [], []>} : vector<8x36xbf16>, vector<36x128xbf16>, vector<8x128xf32> -> vector<8x128xf32>
    %c0_3 = arith.constant 0 : index
    %c0_4 = arith.constant 0 : index
    %3 = vector.load %arg2[%c0_3, %c0_4] : memref<1x128xf32, #tpu.memory_space<vmem>>, vector<1x128xf32>
    %cst_5 = arith.constant 1.000000e+00 : f32
    %4 = vector.broadcast %cst_5 : f32 to vector<1x128xf32>
    %5 = arith.cmpf ole, %3, %4 : vector<1x128xf32>
    %cst_6 = arith.constant 1.000000e+00 : f32
    %6 = vector.broadcast %cst_6 : f32 to vector<1x128xf32>
    %7 = arith.select %5, %6, %3 : vector<1x128xi1>, vector<1x128xf32>
    %cst_7 = arith.constant 1.000000e+00 : f32
    %8 = vector.broadcast %cst_7 : f32 to vector<1x128xf32>
    %9 = arith.divf %8, %7 : vector<1x128xf32>
    %10 = vector.broadcast %9 : vector<1x128xf32> to vector<8x128xf32>
    %11 = arith.mulf %2, %10 : vector<8x128xf32>
    %c0_8 = arith.constant 0 : index
    %c0_9 = arith.constant 0 : index
    %12 = vector.load %arg4[%c0_8, %c0_9] : memref<8x1xf32, #tpu.memory_space<vmem>>, vector<8x1xf32>
    %13 = vector.broadcast %12 : vector<8x1xf32> to vector<8x128xf32>
    %14 = arith.addf %11, %13 : vector<8x128xf32>
    %cst_10 = arith.constant 0.000000e+00 : f32
    %15 = vector.shape_cast %5 : vector<1x128xi1> to vector<1x128xi1>
    %16 = vector.broadcast %15 : vector<1x128xi1> to vector<8x128xi1>
    %17 = vector.broadcast %cst_10 : f32 to vector<8x128xf32>
    %18 = arith.select %16, %17, %14 : vector<8x128xi1>, vector<8x128xf32>
    %cst_11 = arith.constant 0.000000e+00 : f32
    %19 = vector.broadcast %cst_11 : f32 to vector<8x128xf32>
    %20 = arith.cmpf oge, %18, %19 : vector<8x128xf32>
    %cst_12 = arith.constant 2.000000e-01 : f32
    %21 = vector.broadcast %cst_12 : f32 to vector<8x128xf32>
    %22 = arith.mulf %21, %18 : vector<8x128xf32>
    %23 = arith.select %20, %18, %22 : vector<8x128xi1>, vector<8x128xf32>
    %c0_13 = arith.constant 0 : index
    %c0_14 = arith.constant 0 : index
    %24 = vector.load %arg5[%c0_13, %c0_14] : memref<8x128xf32, #tpu.memory_space<vmem>>, vector<8x128xf32>
    tpu.vector_store %arg5[%c0_13, %c0_14], %23 {strides = array<i32>} : memref<8x128xf32, #tpu.memory_space<vmem>>, vector<8x128xf32>,
    %cst_15 = arith.constant 0.111111112 : f32
    %25 = vector.broadcast %cst_15 : f32 to vector<1x128xf32>
    %26 = arith.mulf %7, %25 : vector<1x128xf32>
    %c0_16 = arith.constant 0 : index
    %c0_17 = arith.constant 0 : index
    %27 = vector.load %arg6[%c0_16, %c0_17] : memref<1x128xf32, #tpu.memory_space<vmem>>, vector<1x128xf32>
    tpu.vector_store %arg6[%c0_16, %c0_17], %26 {strides = array<i32>} : memref<1x128xf32, #tpu.memory_space<vmem>>, vector<1x128xf32>,
    return
  }
  func.func @transform_0(%arg0: i32) -> (i32, i32) {
    %c0_i32 = arith.constant 0 : i32
    %c0_i32_0 = arith.constant 0 : i32
    return %c0_i32, %arg0 : i32, i32
  }
  func.func @transform_1(%arg0: i32) -> (i32, i32) {
    %c0_i32 = arith.constant 0 : i32
    %c0_i32_0 = arith.constant 0 : i32
    return %c0_i32, %arg0 : i32, i32
  }
  func.func @transform_2(%arg0: i32) -> (i32, i32) {
    %c0_i32 = arith.constant 0 : i32
    %c0_i32_0 = arith.constant 0 : i32
    %c0_i32_1 = arith.constant 0 : i32
    return %c0_i32, %c0_i32_0 : i32, i32
  }
  func.func @transform_3(%arg0: i32) -> (i32, i32) {
    %c0_i32 = arith.constant 0 : i32
    %c0_i32_0 = arith.constant 0 : i32
    %c0_i32_1 = arith.constant 0 : i32
    return %c0_i32, %c0_i32_0 : i32, i32
  }
  func.func @transform_4(%arg0: i32) -> (i32, i32) {
    %c0_i32 = arith.constant 0 : i32
    %c0_i32_0 = arith.constant 0 : i32
    return %c0_i32, %arg0 : i32, i32
  }
  func.func @transform_5(%arg0: i32) -> (i32, i32) {
    %c0_i32 = arith.constant 0 : i32
    %c0_i32_0 = arith.constant 0 : i32
    return %c0_i32, %arg0 : i32, i32
  }
}

</mosaic_0001>

<llo_original>
// kernel: soft_conv2d.1
$region0: #{soft_conv2d.1}
  #allocation0 [shape = 'u32[]', space=smem, size = 0x4, offset = 0x4, fixed_abs, tag = 'smem constant byte address 0x4 - core index']
  #allocation1 [shape = 'u32[144,128]{1,0:T(1,128)}', space=vmem, size = 0x12000, scoped, tag = 'internal scratch']
  %s0 = inlined_call_operand.vmem [shape: bf16[36,512], index: 0, kind: input, shape index: {}]
  %s1 = inlined_call_operand.vmem [shape: f32[1,512], index: 1, kind: input, shape index: {}]
  %s2 = inlined_call_operand.vmem [shape: bf16[8,36], index: 2, kind: input, shape index: {}]
  %s3 = inlined_call_operand.vmem [shape: f32[8,1], index: 3, kind: input, shape index: {}]
  %s4 = inlined_call_operand.vmem [shape: f32[8,512], index: 4, kind: output, shape index: {0}]
  %s5 = inlined_call_operand.vmem [shape: f32[1,512], index: 5, kind: output, shape index: {1}]
  %6 = xla_tuple %s4, %s5
  %s7 = sld [smem:[#allocation0]]
  $region98: #{soft_conv2d.1} parent=0
    _
  %s9 = ssub.s32 1, %s7
  %s10 = scalar_select 0, %s9, %s7
  $region1: #{soft_conv2d.1} parent=0
    #allocation2 [shape = 'u8[20480]{0}', space=vmem, size = 0x5000, scoped, tag = 'input window, operand 0']
    loop: start=0, step=1, limit=6
    $region2: #{soft_conv2d.1} parent=1 // loop_pre_header
      _
    $region3: #{soft_conv2d.1} parent=1 // loop_header
      %s12 = sphi 0, %s16
      %p13 = scmp.ge.s32.totalorder %s12, 6
      %s22 = sphi 0, %s24
      %s25 = sphi 0, %s22
      %s26 = sphi 0, %s25
      %s42 = sphi 0, %s26
      %s48 = sphi 0, %s50
      %s51 = sphi 0, %s48
      %s52 = sphi 0, %s51
      %s68 = sphi 0, %s52
      %s72 = sphi 0, %s72
      %s74 = sphi 0, %s72
      %s75 = sphi 0, %s74
      %s89 = sphi 0, %s75
      %s93 = sphi 0, %s93
      %s95 = sphi 0, %s93
      %s96 = sphi 0, %s95
      %s110 = sphi 0, %s96
      %s116 = sphi 0, %s118
      %s119 = sphi 0, %s116
      %s120 = sphi 0, %s119
      %s136 = sphi 0, %s120
      %s142 = sphi 0, %s144
      %s145 = sphi 0, %s142
      %s146 = sphi 0, %s145
      %s162 = sphi 0, %s146
    $region4: #{soft_conv2d.1} parent=1 // loop_header_branch
      %15 = sbr.rel (%p13) target = $region8
    $region5: #{soft_conv2d.1} parent=1 // loop_body
      %s17 = ssub.s32 %s12, 1
      %s18 = ssub.s32 %s12, 2
      %s19 = sadd.s32 %s12, 1
      %s20 = ssub.s32 %s12, %s19
      %p21 = scmp.eq.s32.totalorder %s20, 0
      %s23 = sadd.s32 %s22, 1
      %s24 = scalar_select %p21, %s22, %s23
      %p27 = pneg %p21
      %p28 = scmp.eq.s32.totalorder %s12, 3
      %p29 = por %p27, %p28
      %p30 = scmp.ne.s32.totalorder %s22, %s25
      %p31 = scmp.eq.s32.totalorder %s12, 0
      %p32 = por %p30, %p31
      %p33 = scmp.ne.s32.totalorder %s22, %s25
      %p34 = scmp.eq.s32.totalorder %s17, 3
      %p35 = por %p33, %p34
      %p36 = scmp.ne.s32.totalorder %s25, %s26
      %p37 = scmp.eq.s32.totalorder %s17, 0
      %p38 = por %p36, %p37
      %p39 = scmp.ne.s32.totalorder %s25, %s26
      %p40 = scmp.eq.s32.totalorder %s18, 3
      %p41 = por %p39, %p40
      %p43 = scmp.ne.s32.totalorder %s26, %s42
      %p44 = scmp.eq.s32.totalorder %s18, 0
      %p45 = por %p43, %p44
      %s46 = ssub.s32 %s12, %s19
      %p47 = scmp.eq.s32.totalorder %s46, 0
      %s49 = sadd.s32 %s48, 1
      %s50 = scalar_select %p47, %s48, %s49
      %p53 = pneg %p47
      %p54 = scmp.eq.s32.totalorder %s12, 3
      %p55 = por %p53, %p54
      %p56 = scmp.ne.s32.totalorder %s48, %s51
      %p57 = scmp.eq.s32.totalorder %s12, 0
      %p58 = por %p56, %p57
      %p59 = scmp.ne.s32.totalorder %s48, %s51
      %p60 = scmp.eq.s32.totalorder %s17, 3
      %p61 = por %p59, %p60
      %p62 = scmp.ne.s32.totalorder %s51, %s52
      %p63 = scmp.eq.s32.totalorder %s17, 0
      %p64 = por %p62, %p63
      %p65 = scmp.ne.s32.totalorder %s51, %s52
      %p66 = scmp.eq.s32.totalorder %s18, 3
      %p67 = por %p65, %p66
      %p69 = scmp.ne.s32.totalorder %s52, %s68
      %p70 = scmp.eq.s32.totalorder %s18, 0
      %p71 = por %p69, %p70
      %s73 = sadd.s32 %s72, 1
      %p76 = scmp.eq.s32.totalorder %s12, 3
      %p77 = scmp.ne.s32.totalorder %s72, %s74
      %p78 = scmp.eq.s32.totalorder %s12, 0
      %p79 = por %p77, %p78
      %p80 = scmp.ne.s32.totalorder %s72, %s74
      %p81 = scmp.eq.s32.totalorder %s17, 3
      %p82 = por %p80, %p81
      %p83 = scmp.ne.s32.totalorder %s74, %s75
      %p84 = scmp.eq.s32.totalorder %s17, 0
      %p85 = por %p83, %p84
      %p86 = scmp.ne.s32.totalorder %s74, %s75
      %p87 = scmp.eq.s32.totalorder %s18, 3
      %p88 = por %p86, %p87
      %p90 = scmp.ne.s32.totalorder %s75, %s89
      %p91 = scmp.eq.s32.totalorder %s18, 0
      %p92 = por %p90, %p91
      %s94 = sadd.s32 %s93, 1
      %p97 = scmp.eq.s32.totalorder %s12, 3
      %p98 = scmp.ne.s32.totalorder %s93, %s95
      %p99 = scmp.eq.s32.totalorder %s12, 0
      %p100 = por %p98, %p99
      %p101 = scmp.ne.s32.totalorder %s93, %s95
      %p102 = scmp.eq.s32.totalorder %s17, 3
      %p103 = por %p101, %p102
      %p104 = scmp.ne.s32.totalorder %s95, %s96
      %p105 = scmp.eq.s32.totalorder %s17, 0
      %p106 = por %p104, %p105
      %p107 = scmp.ne.s32.totalorder %s95, %s96
      %p108 = scmp.eq.s32.totalorder %s18, 3
      %p109 = por %p107, %p108
      %p111 = scmp.ne.s32.totalorder %s96, %s110
      %p112 = scmp.eq.s32.totalorder %s18, 0
      %p113 = por %p111, %p112
      %s114 = ssub.s32 %s12, %s19
      %p115 = scmp.eq.s32.totalorder %s114, 0
      %s117 = sadd.s32 %s116, 1
      %s118 = scalar_select %p115, %s116, %s117
      %p121 = pneg %p115
      %p122 = scmp.eq.s32.totalorder %s12, 3
      %p123 = por %p121, %p122
      %p124 = scmp.ne.s32.totalorder %s116, %s119
      %p125 = scmp.eq.s32.totalorder %s12, 0
      %p126 = por %p124, %p125
      %p127 = scmp.ne.s32.totalorder %s116, %s119
      %p128 = scmp.eq.s32.totalorder %s17, 3
      %p129 = por %p127, %p128
      %p130 = scmp.ne.s32.totalorder %s119, %s120
      %p131 = scmp.eq.s32.totalorder %s17, 0
      %p132 = por %p130, %p131
      %p133 = scmp.ne.s32.totalorder %s119, %s120
      %p134 = scmp.eq.s32.totalorder %s18, 3
      %p135 = por %p133, %p134
      %p137 = scmp.ne.s32.totalorder %s120, %s136
      %p138 = scmp.eq.s32.totalorder %s18, 0
      %p139 = por %p137, %p138
      %s140 = ssub.s32 %s12, %s19
      %p141 = scmp.eq.s32.totalorder %s140, 0
      %s143 = sadd.s32 %s142, 1
      %s144 = scalar_select %p141, %s142, %s143
      %p147 = pneg %p141
      %p148 = scmp.eq.s32.totalorder %s12, 3
      %p149 = por %p147, %p148
      %p150 = scmp.ne.s32.totalorder %s142, %s145
      %p151 = scmp.eq.s32.totalorder %s12, 0
      %p152 = por %p150, %p151
      %p153 = scmp.ne.s32.totalorder %s142, %s145
      %p154 = scmp.eq.s32.totalorder %s17, 3
      %p155 = por %p153, %p154
      %p156 = scmp.ne.s32.totalorder %s145, %s146
      %p157 = scmp.eq.s32.totalorder %s17, 0
      %p158 = por %p156, %p157
      %p159 = scmp.ne.s32.totalorder %s145, %s146
      %p160 = scmp.eq.s32.totalorder %s18, 3
      %p161 = por %p159, %p160
      %p163 = scmp.ne.s32.totalorder %s146, %s162
      %p164 = scmp.eq.s32.totalorder %s18, 0
      %p165 = por %p163, %p164
      %p166 = scmp.le.s32.totalorder 1, %s12
      %p167 = scmp.lt.s32.totalorder %s12, 5
      %p168 = pnand %p166, %p167
      %p169 = pneg %p168
      // Predicated region
      $region9: #{soft_conv2d.1} parent=5 // pred_check
        _
      $region10: #{soft_conv2d.1} parent=5 // pred_check_branch
        %171 = sbr.rel (%p168) target = $region12
      $region11: #{soft_conv2d.1} parent=5 // pred_region
        %s172 = ssub.s32 %s12, 1
        // Predicated region
        $region13: #{soft_conv2d.1} parent=11 // pred_check
          %p173 = pneg %p85
        $region14: #{soft_conv2d.1} parent=11 // pred_check_branch
          %175 = sbr.rel (%p173) target = $region16
        $region15: #{soft_conv2d.1} parent=11 // pred_region
          _
        $region16: #{soft_conv2d.1} parent=11 // pred_fallthru
          _
        // Predicated region
        $region17: #{soft_conv2d.1} parent=11 // pred_check
          %p176 = pneg %p106
        $region18: #{soft_conv2d.1} parent=11 // pred_check_branch
          %178 = sbr.rel (%p176) target = $region20
        $region19: #{soft_conv2d.1} parent=11 // pred_region
          _
        $region20: #{soft_conv2d.1} parent=11 // pred_fallthru
          _
      $region12: #{soft_conv2d.1} parent=5 // pred_fallthru
        _
      %p179 = scmp.lt.s32.totalorder %s12, 4
      // Predicated region
      $region21: #{soft_conv2d.1} parent=5 // pred_check
        %p180 = pneg %p179
      $region22: #{soft_conv2d.1} parent=5 // pred_check_branch
        %182 = sbr.rel (%p180) target = $region24
      $region23: #{soft_conv2d.1} parent=5 // pred_region
        // Predicated region
        $region25: #{soft_conv2d.1} parent=23 // pred_check
          %p183 = pneg %p32
        $region26: #{soft_conv2d.1} parent=23 // pred_check_branch
          %185 = sbr.rel (%p183) target = $region28
        $region27: #{soft_conv2d.1} parent=23 // pred_region
          %s186 = sand.u32 %s22, 1
          %s187 = sand.u32 %s22, 1
          %s188 = smul.addr %s187, 20
          %s189 = scalar_lea.vmem [#allocation2], %s188
          %s190 = smul.addr %s12, 4
          %s191 = scalar_lea.vmem %s0, %s190
          // Predicated region
          $region29: #{soft_conv2d.1} parent=27 // pred_check
            _
          $region30: #{soft_conv2d.1} parent=27 // pred_check_branch
            %193 = sbr.rel (0) target = $region32
          $region31: #{soft_conv2d.1} parent=27 // pred_region
            // Predicated region
            $region33: #{soft_conv2d.1} parent=31 // pred_check
              _
            $region34: #{soft_conv2d.1} parent=31 // pred_check_branch
              %195 = sbr.rel target = $region36
            $region35: #{soft_conv2d.1} parent=31 // pred_region
              // Predicated region
              $region48: #{soft_conv2d.1} parent=35 // pred_check
                _
              $region49: #{soft_conv2d.1} parent=35 // pred_check_branch
                %218 = sbr.rel (0) target = $region51
              $region50: #{soft_conv2d.1} parent=35 // pred_region
                loop: start=0, step=1, limit=1
                $region52: #{soft_conv2d.1} parent=50 // loop_pre_header
                  _
                $region53: #{soft_conv2d.1} parent=50 // loop_header
                  %s220 = sphi 0, %s224
                  %p221 = scmp.ge.s32.totalorder %s220, 1
                  %s225 = sphi %s191, %s191
                  %s226 = sphi %s189, %s189
                $region54: #{soft_conv2d.1} parent=50 // loop_header_branch
                  %223 = sbr.rel (%p221) target = $region58
                $region55: #{soft_conv2d.1} parent=50 // loop_body
                  _
                $region56: #{soft_conv2d.1} parent=50 // loop_footer
                  %s224 = sadd.s32 1, %s220
                $region57: #{soft_conv2d.1} parent=50 // loop_footer_branch
                  %219 = sbr.rel target = $region53
                $region58: #{soft_conv2d.1} parent=50 // loop_exit
                  _
                loop: start=0, step=1, limit=1
                $region59: #{soft_conv2d.1} parent=50 // loop_pre_header
                  _
                $region60: #{soft_conv2d.1} parent=50 // loop_header
                  %s229 = sphi 0, %s233
                  %p230 = scmp.ge.s32.totalorder %s229, 1
                  %s234 = sphi %s191, %s191
                  %s235 = sphi %s189, %s189
                $region61: #{soft_conv2d.1} parent=50 // loop_header_branch
                  %232 = sbr.rel (%p230) target = $region65
                $region62: #{soft_conv2d.1} parent=50 // loop_body
                  %v236 = vld [vmem:[%s234] sm:$0xf]
                  %237 = vst [vmem:[%s235] sm:$0xf] %v236
                  %v238 = vld [vmem:[%s234 + $0x10] sm:$0xf]
                  %239 = vst [vmem:[%s235 + $0x4] sm:$0xf] %v238
                  %v240 = vld [vmem:[%s234 + $0x20] sm:$0xf]
                  %241 = vst [vmem:[%s235 + $0x8] sm:$0xf] %v240
                  %v242 = vld [vmem:[%s234 + $0x30] sm:$0xf]
                  %243 = vst [vmem:[%s235 + $0xc] sm:$0xf] %v242
                  %v244 = vld [vmem:[%s234 + $0x40] sm:$0xf]
                  %245 = vst [vmem:[%s235 + $0x10] sm:$0xf] %v244
                $region63: #{soft_conv2d.1} parent=50 // loop_footer
                  %s233 = sadd.s32 1, %s229
                $region64: #{soft_conv2d.1} parent=50 // loop_footer_branch
                  %228 = sbr.rel target = $region60
                $region65: #{soft_conv2d.1} parent=50 // loop_exit
                  _
              $region51: #{soft_conv2d.1} parent=35 // pred_fallthru
                _
            $region36: #{soft_conv2d.1} parent=31 // pred_fallthru
              _
            // Predicated region
            $region37: #{soft_conv2d.1} parent=31 // pred_check
              _
            $region38: #{soft_conv2d.1} parent=31 // pred_check_branch
              %197 = sbr.rel (0) target = $region40
            $region39: #{soft_conv2d.1} parent=31 // pred_region
              loop: start=0, step=1, limit=1
              $region41: #{soft_conv2d.1} parent=39 // loop_pre_header
                _
              $region42: #{soft_conv2d.1} parent=39 // loop_header
                %s200 = sphi 0, %s204
                %p201 = scmp.ge.s32.totalorder %s200, 1
                %s205 = sphi %s191, %s191
                %s206 = sphi %s189, %s189
              $region43: #{soft_conv2d.1} parent=39 // loop_header_branch
                %203 = sbr.rel (%p201) target = $region47
              $region44: #{soft_conv2d.1} parent=39 // loop_body
                %v207 = vld [vmem:[%s205] sm:$0xf]
                %208 = vst [vmem:[%s206] sm:$0xf] %v207
                %v209 = vld [vmem:[%s205 + $0x10] sm:$0xf]
                %210 = vst [vmem:[%s206 + $0x4] sm:$0xf] %v209
                %v211 = vld [vmem:[%s205 + $0x20] sm:$0xf]
                %212 = vst [vmem:[%s206 + $0x8] sm:$0xf] %v211
                %v213 = vld [vmem:[%s205 + $0x30] sm:$0xf]
                %214 = vst [vmem:[%s206 + $0xc] sm:$0xf] %v213
                %v215 = vld [vmem:[%s205 + $0x40] sm:$0xf]
                %216 = vst [vmem:[%s206 + $0x10] sm:$0xf] %v215
              $region45: #{soft_conv2d.1} parent=39 // loop_footer
                %s204 = sadd.s32 1, %s200
              $region46: #{soft_conv2d.1} parent=39 // loop_footer_branch
                %199 = sbr.rel target = $region42
              $region47: #{soft_conv2d.1} parent=39 // loop_exit
                _
            $region40: #{soft_conv2d.1} parent=31 // pred_fallthru
              _
          $region32: #{soft_conv2d.1} parent=27 // pred_fallthru
            _
          %246 = vnop
        $region28: #{soft_conv2d.1} parent=23 // pred_fallthru
          _
        // Predicated region
        $region66: #{soft_conv2d.1} parent=23 // pred_check
          %p247 = pneg %p58
        $region67: #{soft_conv2d.1} parent=23 // pred_check_branch
          %249 = sbr.rel (%p247) target = $region69
        $region68: #{soft_conv2d.1} parent=23 // pred_region
          %p250 = scmp.lt.s32.totalorder %s12, 3
          %s251 = scalar_select %p250, %s12, 3
          %s252 = scalar_lea.vmem %s1, %s251
        $region69: #{soft_conv2d.1} parent=23 // pred_fallthru
          _
      $region24: #{soft_conv2d.1} parent=5 // pred_fallthru
        _
      %p253 = scmp.le.s32.totalorder 1, %s12
      %p254 = scmp.lt.s32.totalorder %s12, 5
      %p255 = pnand %p253, %p254
      %p256 = pneg %p255
      // Predicated region
      $region70: #{soft_conv2d.1} parent=5 // pred_check
        _
      $region71: #{soft_conv2d.1} parent=5 // pred_check_branch
        %258 = sbr.rel (%p255) target = $region73
      $region72: #{soft_conv2d.1} parent=5 // pred_region
        %s259 = ssub.s32 %s12, 1
        %s260 = sand.u32 %s25, 1
        %s261 = sand.u32 %s25, 1
        %s262 = smul.addr %s261, 20
        %s263 = scalar_lea.vmem [#allocation2], %s262
        // Predicated region
        $region74: #{soft_conv2d.1} parent=72 // pred_check
          %p264 = pneg %p38
        $region75: #{soft_conv2d.1} parent=72 // pred_check_branch
          %266 = sbr.rel (%p264) target = $region77
        $region76: #{soft_conv2d.1} parent=72 // pred_region
          _
        $region77: #{soft_conv2d.1} parent=72 // pred_fallthru
          _
        %s267 = sand.u32 %s25, 1
        %s268 = sand.u32 %s25, 1
        %s269 = smul.addr %s268, 20
        %s270 = scalar_lea.vmem [#allocation2], %s269
        %p271 = pneg %p38
        %p272 = pneg %p35
        %p273 = scmp.lt.s32.totalorder %s17, 3
        %s274 = scalar_select %p273, %s17, 3
        %s275 = scalar_lea.vmem %s1, %s274
        %p276 = pneg %p64
        %p277 = pneg %p61
        %p278 = pneg %p85
        %p279 = pneg %p82
        %p280 = pneg %p106
        %p281 = pneg %p103
        %p282 = pneg %p132
        %p283 = pneg %p129
        %p284 = scmp.lt.s32.totalorder %s17, 3
        %s285 = scalar_select %p284, %s17, 3
        %s286 = smul.addr %s285, 8
        %s287 = scalar_lea.vmem %s4, %s286
        %p288 = pneg %p158
        %p289 = pneg %p155
        %p290 = scmp.lt.s32.totalorder %s17, 3
        %s291 = scalar_select %p290, %s17, 3
        %s292 = scalar_lea.vmem %s5, %s291
        %p293 = scmp.lt.s32.totalorder %s17, 3
        %s294 = scalar_select %p293, %s17, 3
        %s295 = scalar_lea.vmem %s1, %s294
        %p296 = scmp.lt.s32.totalorder %s17, 3
        %s297 = scalar_select %p296, %s17, 3
        %s298 = smul.addr %s297, 8
        %s299 = scalar_lea.vmem %s4, %s298
        %p300 = scmp.lt.s32.totalorder %s17, 3
        %s301 = scalar_select %p300, %s17, 3
        %s302 = scalar_lea.vmem %s5, %s301
        %v304 = vld [vmem:[%s2] sm:$0xf]
        %v305 = vld [vmem:[%s263] sm:$0xf]
        %v306 = vld [vmem:[%s263 + $0x4] sm:$0xf]
        %v307 = vld [vmem:[%s263 + $0x8] sm:$0xf]
        %v308 = vld [vmem:[%s263 + $0xc] sm:$0xf]
        %v309 = vld [vmem:[%s263 + $0x10] sm:$0x3]
        %v315 = vunpack.c.l.b16 %v305
        %v316 = vunpack.c.l.b16 %v306
        %v317 = vunpack.c.l.b16 %v307
        %v318 = vunpack.c.l.b16 %v308
        %v319 = vunpack.c.l.b16 %v309
        %v320 = vpack.c.b16 %v316, %v315
        %v321 = vpack.c.b16 %v318, %v317
        %v322 = vpack.c.b16 %v319, %v319
        %vm325 = vcmask 293888
        %v327 = vsel %vm325, %v304, 0
        %vm329 = vcmask 1041408
        %v331 = vsel %vm329, %v322, 0
        %333 = vmatprep.subr.bf16.mxu0 0
        %334 = vmatpush1.bf16.msra.mxu0 %v320
        %335 = vmatprep.subr.bf16.mxu0 0
        %336 = vmatpush1.bf16.msra.mxu0 %v321
        %337 = vmatprep.subr.bf16.mxu0 0
        %338 = vmatpush1.bf16.msra.mxu0 %v331
        %339 = vmatprep.subr.bf16.mxu0 0
        %340 = vmatpush1.bf16.msra.mxu0 0
        %341 = vmatprep.subr.bf16.mxu0 0
        %342 = vmatpush1.bf16.msra.mxu0 0
        %343 = vmatprep.subr.bf16.mxu0 0
        %344 = vmatpush1.bf16.msra.mxu0 0
        %345 = vmatprep.subr.bf16.mxu0 0
        %346 = vmatpush1.bf16.msra.mxu0 0
        %347 = vmatprep.subr.bf16.mxu0 0
        %348 = vmatpush1.bf16.msra.mxu0 0
        %349 = vmatprep.subr.bf16.mxu0 0
        %350 = vmatpush1.bf16.msra.mxu0 0
        %351 = vmatprep.subr.bf16.mxu0 0
        %352 = vmatpush1.bf16.msra.mxu0 0
        %353 = vmatprep.subr.bf16.mxu0 0
        %354 = vmatpush1.bf16.msra.mxu0 0
        %355 = vmatprep.subr.bf16.mxu0 0
        %356 = vmatpush1.bf16.msra.mxu0 0
        %357 = vmatprep.subr.bf16.mxu0 0
        %358 = vmatpush1.bf16.msra.mxu0 0
        %359 = vmatprep.subr.bf16.mxu0 0
        %360 = vmatpush1.bf16.msra.mxu0 0
        %361 = vmatprep.subr.bf16.mxu0 0
        %362 = vmatpush1.bf16.msra.mxu0 0
        %363 = vmatprep.subr.bf16.mxu0 0
        %364 = vmatpush1.bf16.msra.mxu0 0
        %365 = vmatprep.mubr.bf16.mxu0 0
        %366 = vmatmul.mubr.bf16.gmra.mrb[0].mxu0 %v327
        %v367 = vpop.f32.mrb[0].mxu0
        %v368 = vadd.f32 0.0, %v367
        %v369 = vpop.f32.mrb[0].mxu0
        %v370 = vpop.f32.mrb[0].mxu0
        %v371 = vpop.f32.mrb[0].mxu0
        %372 = vdwg.mxu0
        %v373 = vld [vmem:[%s295] sm:$0x1]
        %vm374 = vcmp.le.f32.partialorder %v373, 1.0
        %v375 = vsel %vm374, 1.0, %v373
        %v376 = vrcp.pop %v375
        %v377 = vmul.f32 1.0, %v376
        %v379 = vlaneseq
        %v380 = vshrl.u32 %v379, 7
        %v381 = vsub.s32 0, %v380
        %v382 = vrot.slane %v377, %v381
        %v384 = vmul.f32 %v368, %v382
        %v385 = vld [vmem:[%s3] sm:$0xff]
        %387 = vset.pattern.permute.xlu0 0
        %388 = vperm.xlu0 %387, %v385
        %v389 = vpop.permute.xlu0 %388
        %v391 = vadd.f32 %v384, %v389
        %v392 = vsel %vm374, 1, 0
        %v393 = vlaneseq
        %v394 = vshrl.u32 %v393, 7
        %v395 = vsub.s32 0, %v394
        %v396 = vrot.slane %v392, %v395
        %vm397 = vcmp.eq.s32.totalorder %v396, 1
        %v398 = vsel %vm397, 0.0, %v391
        %vm399 = vcmp.ge.f32.partialorder %v398, 0.0
        %v400 = vmul.f32 %v398, 0.2
        %v401 = vsel %vm399, %v398, %v400
        %402 = vst [vmem:[%s299] sm:$0xff] %v401
        %v403 = vmul.f32 %v375, 0.11111111
        %404 = vst [vmem:[%s302] sm:$0x1] %v403
        %p405 = scmp.lt.s32.totalorder %s17, 3
        %s406 = scalar_select %p405, %s17, 3
        %s407 = smul.addr %s406, 8
        %s408 = scalar_lea.vmem %s4, %s407
        %p409 = scmp.lt.s32.totalorder %s17, 3
        %s410 = scalar_select %p409, %s17, 3
        %s411 = scalar_lea.vmem %s5, %s410
        // Predicated region
        $region78: #{soft_conv2d.1} parent=72 // pred_check
          %p412 = pneg %p129
        $region79: #{soft_conv2d.1} parent=72 // pred_check_branch
          %414 = sbr.rel (%p412) target = $region81
        $region80: #{soft_conv2d.1} parent=72 // pred_region
          _
        $region81: #{soft_conv2d.1} parent=72 // pred_fallthru
          _
        // Predicated region
        $region82: #{soft_conv2d.1} parent=72 // pred_check
          %p415 = pneg %p155
        $region83: #{soft_conv2d.1} parent=72 // pred_check_branch
          %417 = sbr.rel (%p415) target = $region85
        $region84: #{soft_conv2d.1} parent=72 // pred_region
          _
        $region85: #{soft_conv2d.1} parent=72 // pred_fallthru
          _
      $region73: #{soft_conv2d.1} parent=5 // pred_fallthru
        _
      %p418 = scmp.le.s32.totalorder 2, %s12
      // Predicated region
      $region86: #{soft_conv2d.1} parent=5 // pred_check
        %p419 = pneg %p418
      $region87: #{soft_conv2d.1} parent=5 // pred_check_branch
        %421 = sbr.rel (%p419) target = $region89
      $region88: #{soft_conv2d.1} parent=5 // pred_region
        %s422 = ssub.s32 %s12, 2
        // Predicated region
        $region90: #{soft_conv2d.1} parent=88 // pred_check
          %p423 = pneg %p135
        $region91: #{soft_conv2d.1} parent=88 // pred_check_branch
          %425 = sbr.rel (%p423) target = $region93
        $region92: #{soft_conv2d.1} parent=88 // pred_region
          %p426 = scmp.lt.s32.totalorder %s18, 3
          %s427 = scalar_select %p426, %s18, 3
          %s428 = smul.addr %s427, 8
          %s429 = scalar_lea.vmem %s4, %s428
        $region93: #{soft_conv2d.1} parent=88 // pred_fallthru
          _
        // Predicated region
        $region94: #{soft_conv2d.1} parent=88 // pred_check
          %p430 = pneg %p161
        $region95: #{soft_conv2d.1} parent=88 // pred_check_branch
          %432 = sbr.rel (%p430) target = $region97
        $region96: #{soft_conv2d.1} parent=88 // pred_region
          %p433 = scmp.lt.s32.totalorder %s18, 3
          %s434 = scalar_select %p433, %s18, 3
          %s435 = scalar_lea.vmem %s5, %s434
        $region97: #{soft_conv2d.1} parent=88 // pred_fallthru
          _
      $region89: #{soft_conv2d.1} parent=5 // pred_fallthru
        _
    $region6: #{soft_conv2d.1} parent=1 // loop_footer
      %s16 = sadd.s32 1, %s12
    $region7: #{soft_conv2d.1} parent=1 // loop_footer_branch
      %11 = sbr.rel target = $region3
    $region8: #{soft_conv2d.1} parent=1 // loop_exit
      _

</llo_original>
